<compile_context>
chip_gen: v6e
topology: v6e:2x2x1
jax: 0.10.0
libtpu: 0.0.40
codegen_flags: <defaults>
</compile_context>

<pallas_src>
import functools
import math

import jax
import jax.numpy as jnp
from jax.experimental import pallas as pl
from jax.experimental.pallas import tpu as pltpu

_VMEM_LIMIT = 32 * 1024 * 1024  # conservative scoped-VMEM budget (fits v5e/v6e/v7x)


def _round_up(x, m):
    return ((x + m - 1) // m) * m


def _cparams():
    return pltpu.CompilerParams(dimension_semantics=("parallel",),
                                vmem_limit_bytes=_VMEM_LIMIT)


# ------------------------------ Pallas kernels ------------------------------ #

def _linear_kernel(x_ref, w_ref, b_ref, o_ref, *, post_relu):
    y = jnp.dot(x_ref[...].astype(jnp.bfloat16), w_ref[...],
                preferred_element_type=jnp.float32)
    y = y + b_ref[...]
    if post_relu:
        y = jnp.maximum(y, 0.0)
    o_ref[...] = y


def pallas_linear(x, w, b, *, post_relu=False, tile_m=512):
    """y = act(x @ w + b); row-tiled, bf16 MXU operands (cast in-kernel), f32 acc."""
    M, K = x.shape
    N = w.shape[1]
    tm = min(tile_m, _round_up(M, 16))
    return pl.pallas_call(
        functools.partial(_linear_kernel, post_relu=post_relu),
        out_shape=jax.ShapeDtypeStruct((M, N), jnp.float32),
        grid=(pl.cdiv(M, tm),),
        in_specs=[
            pl.BlockSpec((tm, K), lambda i: (i, 0)),
            pl.BlockSpec((K, N), lambda i: (0, 0)),
            pl.BlockSpec((1, N), lambda i: (0, 0)),
        ],
        out_specs=pl.BlockSpec((tm, N), lambda i: (i, 0)),
        compiler_params=_cparams(),
    )(x, w.astype(jnp.bfloat16), b.reshape(1, N).astype(jnp.float32))


def _grouped_kqv_kernel(gid_ref, x_ref, kvw_ref, kvb_ref, qw_ref, qb_ref,
                        okv_ref, oq_ref):
    del gid_ref  # only used by the index_maps
    xb = x_ref[...].astype(jnp.bfloat16)
    kv = jnp.dot(xb, kvw_ref[0], preferred_element_type=jnp.float32) + kvb_ref[0]
    q = jnp.dot(xb, qw_ref[0], preferred_element_type=jnp.float32) + qb_ref[0]
    okv_ref[...] = kv.astype(jnp.bfloat16)      # bf16 transport of K|V
    oq_ref[...] = q.astype(jnp.bfloat16)        # bf16 transport of Q


def grouped_kqv(h_arena, kv_w, kv_b, q_w, q_b, gid_tiles, tile_m):
    """Per-node-type fused K/V/Q projection in one pipelined grouped pallas_call.

    A per-row-tile group id (scalar-prefetched into SMEM) selects the weight
    blocks in the index_maps (grouped-matmul / MoE pattern)."""
    Mp, hid = h_arena.shape
    two_hid = kv_w.shape[2]
    return pl.pallas_call(
        _grouped_kqv_kernel,
        out_shape=(jax.ShapeDtypeStruct((Mp, two_hid), jnp.bfloat16),
                   jax.ShapeDtypeStruct((Mp, hid), jnp.bfloat16)),
        grid_spec=pltpu.PrefetchScalarGridSpec(
            num_scalar_prefetch=1,
            grid=(Mp // tile_m,),
            in_specs=[
                pl.BlockSpec((tile_m, hid), lambda i, gid: (i, 0)),
                pl.BlockSpec((1, hid, two_hid), lambda i, gid: (gid[i], 0, 0)),
                pl.BlockSpec((1, 1, two_hid), lambda i, gid: (gid[i], 0, 0)),
                pl.BlockSpec((1, hid, hid), lambda i, gid: (gid[i], 0, 0)),
                pl.BlockSpec((1, 1, hid), lambda i, gid: (gid[i], 0, 0)),
            ],
            out_specs=[
                pl.BlockSpec((tile_m, two_hid), lambda i, gid: (i, 0)),
                pl.BlockSpec((tile_m, hid), lambda i, gid: (i, 0)),
            ],
        ),
        compiler_params=_cparams(),
    )(gid_tiles, h_arena, kv_w, kv_b, q_w, q_b)


def _grouped_rel_kernel(gid_ref, src_ref, kv_ref, w_ref, o_ref):
    del gid_ref, src_ref  # only used by the index_maps
    o_ref[...] = jnp.dot(kv_ref[...], w_ref[0],
                         preferred_element_type=jnp.float32).astype(jnp.bfloat16)


def grouped_rel(kv_all, rel_w, gid_rel, src_blk, tile_m, mr):
    """Per-edge-type block-diagonal relation transform of the source [K|V] slab.

    Reads the K|V arena directly: a scalar-prefetched per-tile source block index
    selects the input tile (no intermediate concatenated copy), and a per-tile
    edge-type id selects the relation matrix.  p_rel / sqrt(D) are pre-folded
    into the K block of rel_w."""
    _, two_hid = kv_all.shape
    return pl.pallas_call(
        _grouped_rel_kernel,
        out_shape=jax.ShapeDtypeStruct((mr, two_hid), jnp.bfloat16),
        grid_spec=pltpu.PrefetchScalarGridSpec(
            num_scalar_prefetch=2,
            grid=(mr // tile_m,),
            in_specs=[
                pl.BlockSpec((tile_m, two_hid), lambda i, gid, src: (src[i], 0)),
                pl.BlockSpec((1, two_hid, two_hid), lambda i, gid, src: (gid[i], 0, 0)),
            ],
            out_specs=pl.BlockSpec((tile_m, two_hid), lambda i, gid, src: (i, 0)),
        ),
        compiler_params=_cparams(),
    )(gid_rel, src_blk, kv_all, rel_w)


def _grouped_out_kernel(gid_ref, x_ref, h_ref, w_ref, b_ref, sk_ref, o_ref):
    del gid_ref
    a = jnp.dot(x_ref[...].astype(jnp.bfloat16), w_ref[0],
                preferred_element_type=jnp.float32) + b_ref[0]
    sk = sk_ref[0, 0, 0]                                  # sigmoid(skip) per type
    o_ref[...] = sk * a + (1.0 - sk) * h_ref[...]


def grouped_out(x_act, h_arena, out_w, out_b, sk_stack, gid_tiles, tile_m):
    """Per-dst-type out_lin matmul fused with the sigmoid-skip residual blend."""
    Mp, hid = x_act.shape
    return pl.pallas_call(
        _grouped_out_kernel,
        out_shape=jax.ShapeDtypeStruct((Mp, hid), jnp.float32),
        grid_spec=pltpu.PrefetchScalarGridSpec(
            num_scalar_prefetch=1,
            grid=(Mp // tile_m,),
            in_specs=[
                pl.BlockSpec((tile_m, hid), lambda i, gid: (i, 0)),
                pl.BlockSpec((tile_m, hid), lambda i, gid: (i, 0)),
                pl.BlockSpec((1, hid, hid), lambda i, gid: (gid[i], 0, 0)),
                pl.BlockSpec((1, 1, hid), lambda i, gid: (gid[i], 0, 0)),
                pl.BlockSpec((1, 1, 1), lambda i, gid: (gid[i], 0, 0)),
            ],
            out_specs=pl.BlockSpec((tile_m, hid), lambda i, gid: (i, 0)),
        ),
        compiler_params=_cparams(),
    )(gid_tiles, x_act, h_arena, out_w, out_b, sk_stack)


def _edge_score_kernel(q_ref, k_ref, sel_ref, o_ref):
    # elementwise product in f32 (v5e VPU has no bf16), MXU reduce in bf16
    prod = q_ref[...].astype(jnp.float32) * k_ref[...].astype(jnp.float32)
    o_ref[...] = jnp.dot(prod.astype(jnp.bfloat16), sel_ref[...],
                         preferred_element_type=jnp.float32)


def pallas_edge_score(q_e, k_e, sel, *, tile_e=8192):
    """score[e,h] = <q_e[e,h*D:(h+1)D], k_e[...]>; p_rel/sqrt(D) already folded
    into k_e via the relation matrix.  Tiled over edges, bf16 transport."""
    E, hid = q_e.shape
    H = sel.shape[1]
    te = min(tile_e, _round_up(E, 16))
    return pl.pallas_call(
        _edge_score_kernel,
        out_shape=jax.ShapeDtypeStruct((E, H), jnp.float32),
        grid=(pl.cdiv(E, te),),
        in_specs=[
            pl.BlockSpec((te, hid), lambda i: (i, 0)),
            pl.BlockSpec((te, hid), lambda i: (i, 0)),
            pl.BlockSpec((hid, H), lambda i: (0, 0)),
        ],
        out_specs=pl.BlockSpec((te, H), lambda i: (i, 0)),
        compiler_params=_cparams(),
    )(q_e, k_e, sel)


def _edge_message_kernel(num_ref, den_ref, v_ref, exp_ref, o_ref):
    inv = pl.reciprocal(jnp.maximum(den_ref[...], 1e-16), approx=True)  # EUP slot
    alpha = num_ref[...] * inv                                          # [te, H] f32
    alpha_full = jnp.dot(alpha, exp_ref[...],
                         preferred_element_type=jnp.float32)            # [te, H*D]
    o_ref[...] = alpha_full * v_ref[...].astype(jnp.float32)


def pallas_edge_message(num, den_e, v_e, expand, *, tile_e=8192):
    """msg[e, h*D+d] = softmax-alpha[e,h] * v_e[e, h*D+d]; divide + head-expand fused."""
    E, H = num.shape
    hid = v_e.shape[1]
    te = min(tile_e, _round_up(E, 16))
    return pl.pallas_call(
        _edge_message_kernel,
        out_shape=jax.ShapeDtypeStruct((E, hid), jnp.float32),
        grid=(pl.cdiv(E, te),),
        in_specs=[
            pl.BlockSpec((te, H), lambda i: (i, 0)),
            pl.BlockSpec((te, H), lambda i: (i, 0)),
            pl.BlockSpec((te, hid), lambda i: (i, 0)),
            pl.BlockSpec((H, hid), lambda i: (0, 0)),
        ],
        out_specs=pl.BlockSpec((te, hid), lambda i: (i, 0)),
        compiler_params=_cparams(),
    )(num, den_e, v_e, expand)


# ------------------------------ small helpers ------------------------------ #

def _head_sum_matrix(H, D):
    """[H*D, H] indicator: column h sums that head's D lanes (MXU reduce)."""
    return jnp.repeat(jnp.eye(H, dtype=jnp.float32), D, axis=0)


def _head_expand_matrix(H, D):
    """[H, H*D] indicator: broadcasts per-head alpha across its D lanes (MXU)."""
    return jnp.repeat(jnp.eye(H, dtype=jnp.float32), D, axis=1)


def _block_diag(blocks):
    n = sum(b.shape[0] for b in blocks)
    m = sum(b.shape[1] for b in blocks)
    out = jnp.zeros((n, m), blocks[0].dtype)
    r = c = 0
    for b in blocks:
        out = out.at[r:r + b.shape[0], c:c + b.shape[1]].set(b)
        r += b.shape[0]
        c += b.shape[1]
    return out


# --------------------------- parameter initializers ------------------------- #

def init_linear(key, fan_in, fan_out):
    kw, kb = jax.random.split(key)
    bound = 1.0 / math.sqrt(fan_in)
    w = jax.random.uniform(kw, (fan_in, fan_out), jnp.float32, -bound, bound)
    b = jax.random.uniform(kb, (fan_out,), jnp.float32, -bound, bound)
    return w, b


def init_hgt_layer(key, node_types, edge_types, hidden, heads):
    """Raw parameters matching torch_geometric HGTConv's reset_parameters."""
    D = hidden // heads
    raw = {'kqv': {}, 'out': {}, 'skip': {}, 'k_rel': {}, 'v_rel': {}, 'p_rel': {}}
    for nt in node_types:
        key, k1, k2 = jax.random.split(key, 3)
        raw['kqv'][nt] = init_linear(k1, hidden, 3 * hidden)   # cols = [k | q | v]
        raw['out'][nt] = init_linear(k2, hidden, hidden)
        raw['skip'][nt] = jnp.float32(1.0)                     # PyG reset: ones
    for et in edge_types:
        key, k1, k2 = jax.random.split(key, 3)
        raw['k_rel'][et] = (jax.random.normal(k1, (heads, D, D), jnp.float32)
                            / math.sqrt(D))
        raw['v_rel'][et] = (jax.random.normal(k2, (heads, D, D), jnp.float32)
                            / math.sqrt(D))
        raw['p_rel'][et] = jnp.ones((heads,), jnp.float32)     # PyG reset: ones
    return raw


def prepare_hgt_layer(raw, node_types, edge_types, hidden, heads):
    """Fold heads into the lane axis ahead of the forward pass:
       * kqv split into a [k|v] weight stack and a q weight stack per node type,
       * per-head k_rel / v_rel stacked into ONE block-diagonal [2*hid, 2*hid]
         matrix per edge type, with p_rel[h] / sqrt(D) folded into the K block,
       * out_lin weights stacked; sigmoid(skip) precomputed per type,
       * all matmul weights cast to bf16 once."""
    hid = hidden
    D = hid // heads
    kv_w, kv_b, q_w, q_b, out_w, out_b, sk = [], [], [], [], [], [], []
    for nt in node_types:
        w, b = raw['kqv'][nt]
        kw_, qw_, vw_ = w[:, :hid], w[:, hid:2 * hid], w[:, 2 * hid:]
        kb_, qb_, vb_ = b[:hid], b[hid:2 * hid], b[2 * hid:]
        kv_w.append(jnp.concatenate([kw_, vw_], axis=1))
        kv_b.append(jnp.concatenate([kb_, vb_]))
        q_w.append(qw_)
        q_b.append(qb_)
        ow, ob = raw['out'][nt]
        out_w.append(ow)
        out_b.append(ob)
        sk.append(jax.nn.sigmoid(raw['skip'][nt]))
    rel_w = []
    for et in edge_types:
        p = raw['p_rel'][et]
        blocks = [raw['k_rel'][et][h] * (p[h] / math.sqrt(D)) for h in range(heads)]
        blocks += [raw['v_rel'][et][h] for h in range(heads)]
        rel_w.append(_block_diag(blocks))                      # [2*hid, 2*hid]
    return {
        'kv_w': jnp.stack(kv_w).astype(jnp.bfloat16),          # [T, hid, 2*hid]
        'kv_b': jnp.stack(kv_b)[:, None, :].astype(jnp.float32),
        'q_w': jnp.stack(q_w).astype(jnp.bfloat16),            # [T, hid, hid]
        'q_b': jnp.stack(q_b)[:, None, :].astype(jnp.float32),
        'out_w': jnp.stack(out_w).astype(jnp.bfloat16),        # [T, hid, hid]
        'out_b': jnp.stack(out_b)[:, None, :].astype(jnp.float32),
        'rel_w': jnp.stack(rel_w).astype(jnp.bfloat16),        # [G, 2*hid, 2*hid]
        'sk': jnp.stack(sk).reshape(-1, 1, 1).astype(jnp.float32),
    }


def build_node_arena(node_counts, node_types, tile_m):
    """Padded, tile-aligned node arena shared by all conv layers: each node type
    occupies a contiguous, tile-aligned row range so grouped kernels never repack.
    NOTE: padded rows run through the grouped matmuls and are sliced off at the
    end (extra compute, correct results)."""
    tm = min(tile_m, _round_up(max(node_counts.values()), 16))
    offset, padded, gid = {}, {}, []
    cum = 0
    for t, nt in enumerate(node_types):
        offset[nt] = cum
        p = _round_up(max(node_counts[nt], 1), tm)
        padded[nt] = p
        gid += [t] * (p // tm)
        cum += p
    return {'node_types': node_types, 'offset': offset, 'count': dict(node_counts),
            'padded': padded, 'total': cum, 'tm': tm,
            'gid_tiles': jnp.asarray(gid, jnp.int32)}


def build_edge_plan(arena, edge_index_dict, edge_types):
    """Per-tile edge-type id + source block index for the relation transform,
    plus the bipartite edge list in arena coordinates (computed once, reused by
    every layer)."""
    tm = arena['tm']
    gid_rel, src_blk, src_off = [], [], {}
    cum = 0
    for g, et in enumerate(edge_types):
        st = et[0]
        nblk = arena['padded'][st] // tm
        gid_rel += [g] * nblk
        base = arena['offset'][st] // tm
        src_blk += list(range(base, base + nblk))
        src_off[et] = cum
        cum += arena['padded'][st]
    e_src = jnp.concatenate([edge_index_dict[et][0] + src_off[et]
                             for et in edge_types])
    e_dst = jnp.concatenate([edge_index_dict[et][1] + arena['offset'][et[2]]
                             for et in edge_types])
    return {'gid_rel': jnp.asarray(gid_rel, jnp.int32),
            'src_blk': jnp.asarray(src_blk, jnp.int32),
            'e_src': e_src, 'e_dst': e_dst, 'mr': cum}


# ------------------------------- HGT forward -------------------------------- #

def hgt_conv(h_arena, arena, plan, lp, *, heads, hidden, tile_e=8192):
    """Semantics of torch_geometric HGTConv on the padded node arena."""
    hid = hidden
    H = heads
    D = hid // H
    tm = arena['tm']
    Mp = arena['total']

    # fused K/V/Q projection, grouped over node types (single pallas_call, bf16 out)
    kv_all, q_all = grouped_kqv(h_arena, lp['kv_w'], lp['kv_b'], lp['q_w'], lp['q_b'],
                                arena['gid_tiles'], tm)

    # per-edge-type relation transform of source [K | V] read straight from the
    # K|V arena via prefetched source-block indices (p_rel / sqrt(D) pre-folded)
    kv_rel = grouped_rel(kv_all, lp['rel_w'], plan['gid_rel'], plan['src_blk'],
                         tm, plan['mr'])

    e_src, e_dst = plan['e_src'], plan['e_dst']
    # TODO(synk): ragged gather / segment-softmax / scatter-add (data-dependent
    # indices) stay in plain JAX; fusing them into the edge kernels needs
    # dst-sorted CSR offsets prefetched into SMEM.
    q_e = q_all[e_dst]                                         # [E, hid] bf16
    k_e = kv_rel[e_src, :hid]                                  # [E, hid] bf16
    v_e = kv_rel[e_src, hid:]                                  # [E, hid] bf16

    sel = _head_sum_matrix(H, D).astype(jnp.bfloat16)
    score = pallas_edge_score(q_e, k_e, sel, tile_e=tile_e)    # [E, H] f32
    m = jax.ops.segment_max(score, e_dst, num_segments=Mp)
    m = jnp.where(jnp.isfinite(m), m, 0.0)
    num = jnp.exp(score - m[e_dst])
    den = jax.ops.segment_sum(num, e_dst, num_segments=Mp)
    msg = pallas_edge_message(num, den[e_dst], v_e, _head_expand_matrix(H, D),
                              tile_e=tile_e)                   # [E, hid] f32
    agg = jax.ops.segment_sum(msg, e_dst, num_segments=Mp)     # [Mp, hid]

    # TODO(synk): exact-erf GELU stays in XLA (no guaranteed erf lowering in
    # Mosaic); the out_lin matmul + sigmoid-skip residual blend are fused below.
    act = jax.nn.gelu(agg, approximate=False)
    return grouped_out(act, h_arena, lp['out_w'], lp['out_b'], lp['sk'],
                       arena['gid_tiles'], tm)


def fasten_hgt_forward(params, x_dict, edge_index_dict, *, heads, hidden, node_out,
                       tile_m=512, tile_e=8192):
    node_types = params['node_types']
    edge_types = params['edge_types']
    counts = {nt: x_dict[nt].shape[0] for nt in node_types}
    arena = build_node_arena(counts, node_types, tile_m)
    plan = build_edge_plan(arena, edge_index_dict, edge_types)

    # x_dict = {nt: relu(lin_dict[nt](x))}, packed once into the padded node arena
    pieces = []
    for nt in node_types:
        w, b = params['lin_dict'][nt]
        h = pallas_linear(x_dict[nt], w, b, post_relu=True, tile_m=tile_m)
        pieces.append(jnp.pad(h, ((0, arena['padded'][nt] - counts[nt]), (0, 0))))
    h_arena = jnp.concatenate(pieces, axis=0)                  # [Mp, hidden] f32

    for lp in params['layers']:
        h_arena = hgt_conv(h_arena, arena, plan, lp, heads=heads, hidden=hidden,
                           tile_e=tile_e)

    # final classifier on the output node type
    w, b = params['lin']
    s = arena['offset'][node_out]
    n = counts[node_out]
    return pallas_linear(h_arena[s:s + n], w, b, tile_m=tile_m)


# ----------------------------------- main ----------------------------------- #

if __name__ == "__main__":
    hidden_channels, out_channels, num_heads, num_layers = 32, 8, 2, 2
    node_types = ['author', 'paper']
    edge_types = [('author', 'writes', 'paper'), ('paper', 'rev_writes', 'author')]
    num_nodes = {'author': 16, 'paper': 24}
    in_dims = {'author': 24, 'paper': 16}
    num_edges = {edge_types[0]: 40, edge_types[1]: 40}
    node_out = 'author'   # args.example == 'dblp'

    key = jax.random.PRNGKey(0)

    # node features
    x_dict = {}
    for nt in node_types:
        key, kf = jax.random.split(key)
        x_dict[nt] = jax.random.normal(kf, (num_nodes[nt], in_dims[nt]), jnp.float32)

    # edges (edge_index[0] = src, edge_index[1] = dst, PyG convention)
    edge_index_dict = {}
    for et in edge_types:
        key, ks, kd = jax.random.split(key, 3)
        src = jax.random.randint(ks, (num_edges[et],), 0, num_nodes[et[0]])
        dst = jax.random.randint(kd, (num_edges[et],), 0, num_nodes[et[2]])
        edge_index_dict[et] = jnp.stack([src, dst], axis=0)

    # parameters (deterministic synthetic init, pre-fused for the grouped kernels)
    params = {'node_types': node_types, 'edge_types': edge_types,
              'lin_dict': {}, 'layers': [], 'lin': None}
    for nt in node_types:
        key, k1 = jax.random.split(key)
        params['lin_dict'][nt] = init_linear(k1, in_dims[nt], hidden_channels)
    for _ in range(num_layers):
        key, k1 = jax.random.split(key)
        raw = init_hgt_layer(k1, node_types, edge_types, hidden_channels, num_heads)
        params['layers'].append(
            prepare_hgt_layer(raw, node_types, edge_types, hidden_channels, num_heads))
    key, k1 = jax.random.split(key)
    params['lin'] = init_linear(k1, hidden_channels, out_channels)

    out = fasten_hgt_forward(params, x_dict, edge_index_dict,
                             heads=num_heads, hidden=hidden_channels,
                             node_out=node_out)
    out = jax.block_until_ready(out)
    assert out.shape == (num_nodes[node_out], out_channels)
    assert bool(jnp.all(jnp.isfinite(out)))
    print("KERNEL_OK")
</pallas_src>

<mosaic_0001>
module attributes {stable_mosaic.version = 11 : i64} {
  func.func @_linear_kernel(%arg0: i32, %arg1: memref<16x24xf32, #tpu.memory_space<vmem>>, %arg2: memref<24x32xbf16, #tpu.memory_space<vmem>>, %arg3: memref<1x32xf32, #tpu.memory_space<vmem>>, %arg4: memref<16x32xf32, #tpu.memory_space<vmem>>) attributes {dimension_semantics = [#tpu.dimension_semantics<parallel>], iteration_bounds = array<i64: 1>, scalar_prefetch = 0 : i64, scratch_operands = 0 : i64, tpu.core_type = #tpu.core_type<tc>, window_params = [{transform_indices = @transform_0, window_bounds = array<i64: 16, 24>}, {pipeline_mode = #tpu.pipeline_mode<synchronous>, transform_indices = @transform_1, window_bounds = array<i64: 24, 32>}, {pipeline_mode = #tpu.pipeline_mode<synchronous>, transform_indices = @transform_2, window_bounds = array<i64: 1, 32>}, {transform_indices = @transform_3, window_bounds = array<i64: 16, 32>}]} {
    %c0 = arith.constant 0 : index
    %c0_0 = arith.constant 0 : index
    %0 = vector.load %arg1[%c0, %c0_0] : memref<16x24xf32, #tpu.memory_space<vmem>>, vector<16x24xf32>
    %1 = arith.truncf %0 : vector<16x24xf32> to vector<16x24xbf16>
    %c0_1 = arith.constant 0 : index
    %c0_2 = arith.constant 0 : index
    %2 = vector.load %arg2[%c0_1, %c0_2] : memref<24x32xbf16, #tpu.memory_space<vmem>>, vector<24x32xbf16>
    %cst = arith.constant dense<0.000000e+00> : vector<16x32xf32>
    %3 = tpu.matmul %1, %2, %cst {dimension_numbers = #tpu.dot_dimension_numbers<[1], [0], [0], [1], [0, 0, 1, 1], [], []>} : vector<16x24xbf16>, vector<24x32xbf16>, vector<16x32xf32> -> vector<16x32xf32>
    %c0_3 = arith.constant 0 : index
    %c0_4 = arith.constant 0 : index
    %4 = vector.load %arg3[%c0_3, %c0_4] : memref<1x32xf32, #tpu.memory_space<vmem>>, vector<1x32xf32>
    %5 = vector.broadcast %4 : vector<1x32xf32> to vector<16x32xf32>
    %6 = arith.addf %3, %5 : vector<16x32xf32>
    %cst_5 = arith.constant 0.000000e+00 : f32
    %7 = vector.broadcast %cst_5 : f32 to vector<16x32xf32>
    %8 = arith.maximumf %6, %7 : vector<16x32xf32>
    %c0_6 = arith.constant 0 : index
    %c0_7 = arith.constant 0 : index
    %9 = vector.load %arg4[%c0_6, %c0_7] : memref<16x32xf32, #tpu.memory_space<vmem>>, vector<16x32xf32>
    tpu.vector_store %arg4[%c0_6, %c0_7], %8 {strides = array<i32>} : memref<16x32xf32, #tpu.memory_space<vmem>>, vector<16x32xf32>,
    return
  }
  func.func @transform_0(%arg0: i32) -> (i32, i32) {
    %c0_i32 = arith.constant 0 : i32
    %c0_i32_0 = arith.constant 0 : i32
    return %arg0, %c0_i32 : i32, i32
  }
  func.func @transform_1(%arg0: i32) -> (i32, i32) {
    %c0_i32 = arith.constant 0 : i32
    %c0_i32_0 = arith.constant 0 : i32
    %c0_i32_1 = arith.constant 0 : i32
    return %c0_i32, %c0_i32_0 : i32, i32
  }
  func.func @transform_2(%arg0: i32) -> (i32, i32) {
    %c0_i32 = arith.constant 0 : i32
    %c0_i32_0 = arith.constant 0 : i32
    %c0_i32_1 = arith.constant 0 : i32
    return %c0_i32, %c0_i32_0 : i32, i32
  }
  func.func @transform_3(%arg0: i32) -> (i32, i32) {
    %c0_i32 = arith.constant 0 : i32
    %c0_i32_0 = arith.constant 0 : i32
    return %arg0, %c0_i32 : i32, i32
  }
}

</mosaic_0001>

<llo_original>
// kernel: tpu_custom_call.1
$region0: #{tpu_custom_call.1}
  #allocation0 [shape = 'u32[]', space=smem, size = 0x4, offset = 0x4, fixed_abs, tag = 'smem constant byte address 0x4 - core index']
  #allocation1 [shape = 'u32[144,128]{1,0:T(1,128)}', space=vmem, size = 0x12000, scoped, tag = 'internal scratch']
  %s0 = inlined_call_operand.hbm [shape: f32[16,24], index: 0, kind: input, shape index: {}]
  %s1 = inlined_call_operand.hbm [shape: bf16[24,32], index: 1, kind: input, shape index: {}]
  %s2 = inlined_call_operand.vmem [shape: f32[1,32], index: 2, kind: input, shape index: {}]
  %s3 = inlined_call_operand.hbm [shape: f32[16,32], index: 3, kind: output, shape index: {}]
  %s4 = sld [smem:[#allocation0]]
  $region30: #{tpu_custom_call.1} parent=0
    _
  %s6 = ssub.s32 1, %s4
  %s7 = scalar_select 0, %s6, %s4
  $region1: #{tpu_custom_call.1} parent=0
    #allocation2 [shape = 'u8[8192]{0}', space=vmem, size = 0x2000, scoped, tag = 'input window, operand 0, single buffered']
    #allocation3 [shape = 's32[1]{0}', space=sflag, size = 0x4, scoped, tag = 'scoped memory for tpu_custom_call.1']
    #allocation4 [shape = 's32[1]{0}', space=sflag, size = 0x4, scoped, tag = 'scoped memory for tpu_custom_call.1']
    #allocation5 [shape = 'u8[6144]{0}', space=vmem, size = 0x1800, scoped, tag = 'input window, operand 1, single buffered']
    #allocation6 [shape = 's32[1]{0}', space=sflag, size = 0x4, scoped, tag = 'scoped memory for tpu_custom_call.1']
    #allocation7 [shape = 'u8[8192]{0}', space=vmem, size = 0x2000, scoped, tag = 'output window, operand 0, single buffered']
    %8 = vsyncpa [#allocation3], 0
    %9 = vsyncpa [#allocation6], 0
    %10 = vsyncpa [#allocation4], 0
    // Predicated region
    $region2: #{tpu_custom_call.1} parent=1 // pred_check
      _
    $region3: #{tpu_custom_call.1} parent=1 // pred_check_branch
      %12 = sbr.rel (0) target = $region5
    $region4: #{tpu_custom_call.1} parent=1 // pred_region
      %s14 = ssub.s32 256, 256
      %15 = vsyncadd [#allocation3], %s14
      %s16 = sshll.u32 [#allocation2], 4
      %s17 = int_to_ptr.vmem [resolvable:$true] %s16
      %22 = dma.hbm_to_vmem [thread:$0]  %s0, 256, %s17, [#allocation3], 128, 128, 8
    $region5: #{tpu_custom_call.1} parent=1 // pred_fallthru
      _
    // Predicated region
    $region6: #{tpu_custom_call.1} parent=1 // pred_check
      _
    $region7: #{tpu_custom_call.1} parent=1 // pred_check_branch
      %24 = sbr.rel (0) target = $region9
    $region8: #{tpu_custom_call.1} parent=1 // pred_region
      %s26 = ssub.s32 192, 192
      %27 = vsyncadd [#allocation6], %s26
      %s28 = sshll.u32 [#allocation5], 4
      %s29 = int_to_ptr.vmem [resolvable:$true] %s28
      %34 = dma.hbm_to_vmem [thread:$0]  %s1, 192, %s29, [#allocation6], 64, 64, 4
    $region9: #{tpu_custom_call.1} parent=1 // pred_fallthru
      _
    // Predicated region
    $region10: #{tpu_custom_call.1} parent=1 // pred_check
      _
    $region11: #{tpu_custom_call.1} parent=1 // pred_check_branch
      %36 = sbr.rel (0) target = $region13
    $region12: #{tpu_custom_call.1} parent=1 // pred_region
      _
    $region13: #{tpu_custom_call.1} parent=1 // pred_fallthru
      _
    // Predicated region
    $region14: #{tpu_custom_call.1} parent=1 // pred_check
      _
    $region15: #{tpu_custom_call.1} parent=1 // pred_check_branch
      %38 = sbr.rel (0) target = $region17
    $region16: #{tpu_custom_call.1} parent=1 // pred_region
      %39 = dma.done [#allocation3], 256
    $region17: #{tpu_custom_call.1} parent=1 // pred_fallthru
      _
    // Predicated region
    $region18: #{tpu_custom_call.1} parent=1 // pred_check
      _
    $region19: #{tpu_custom_call.1} parent=1 // pred_check_branch
      %41 = sbr.rel (0) target = $region21
    $region20: #{tpu_custom_call.1} parent=1 // pred_region
      %42 = dma.done [#allocation6], 192
    $region21: #{tpu_custom_call.1} parent=1 // pred_fallthru
      _
    %v44 = vld [vmem:[#allocation2] sm:$0xff]
    %v45 = vld [vmem:[#allocation2 + $0x8] sm:$0xff]
    %v46 = vpack.c.bf16 %v45, %v44
    %v47 = vld [vmem:[#allocation5] sm:$0xf]
    %v48 = vld [vmem:[#allocation5 + $0x4] sm:$0xf]
    %v49 = vld [vmem:[#allocation5 + $0x8] sm:$0xf]
    %v50 = vld [vmem:[%s2] sm:$0x1]
    %v52 = vlaneseq
    %v53 = vshrl.u32 %v52, 7
    %v54 = vsub.s32 0, %v53
    %v55 = vrot.slane %v50, %v54
    %v60 = vunpack.c.l.b16 %v47
    %v61 = vunpack.c.l.b16 %v48
    %v62 = vunpack.c.l.b16 %v49
    %v63 = vpack.c.b16 %v61, %v60
    %v64 = vpack.c.b16 %v62, %v62
    %vm66 = vcmask 195584
    %v68 = vsel %vm66, %v46, 0
    %vm70 = vcmask 1043456
    %v72 = vsel %vm70, %v64, 0
    %74 = vmatprep.subr.bf16.mxu0 0
    %75 = vmatpush1.bf16.msra.mxu0 0
    %76 = vmatprep.subr.bf16.mxu0 0
    %77 = vmatpush1.bf16.msra.mxu0 0
    %78 = vmatprep.subr.bf16.mxu0 0
    %79 = vmatpush1.bf16.msra.mxu0 0
    %80 = vmatprep.subr.bf16.mxu0 0
    %81 = vmatpush1.bf16.msra.mxu0 0
    %82 = vmatprep.subr.bf16.mxu0 0
    %83 = vmatpush1.bf16.msra.mxu0 0
    %84 = vmatprep.subr.bf16.mxu0 0
    %85 = vmatpush1.bf16.msra.mxu0 0
    %86 = vmatprep.subr.bf16.mxu0 0
    %87 = vmatpush1.bf16.msra.mxu0 %v72
    %88 = vmatprep.subr.bf16.mxu0 0
    %89 = vmatpush1.bf16.msra.mxu0 %v63
    %90 = vmatprep.subr.bf16.mxu0 0
    %91 = vmatpush2.bf16.msra.mxu0 0
    %92 = vmatprep.subr.bf16.mxu0 0
    %93 = vmatpush2.bf16.msra.mxu0 0
    %94 = vmatprep.subr.bf16.mxu0 0
    %95 = vmatpush2.bf16.msra.mxu0 0
    %96 = vmatprep.subr.bf16.mxu0 0
    %97 = vmatpush2.bf16.msra.mxu0 0
    %98 = vmatprep.subr.bf16.mxu0 0
    %99 = vmatpush2.bf16.msra.mxu0 0
    %100 = vmatprep.subr.bf16.mxu0 0
    %101 = vmatpush2.bf16.msra.mxu0 0
    %102 = vmatprep.subr.bf16.mxu0 0
    %103 = vmatpush2.bf16.msra.mxu0 0
    %104 = vmatprep.subr.bf16.mxu0 0
    %105 = vmatpush2.bf16.msra.mxu0 0
    %106 = vmatprep.mubr.bf16.mxu0 0
    %107 = vmatmul.mubr.bf16.gmra.mxu0 %v68
    %v108 = vpop.f32.mrf.mxu0
    %v109 = vadd.f32 %v55, %v108
    %v110 = vpop.f32.mrf.mxu0
    %v111 = vpop.f32.mrf.mxu0
    %v112 = vadd.f32 %v55, %v111
    %v113 = vpop.f32.mrf.mxu0
    %114 = vdwg.mxu0
    %v115 = vmax.f32 %v109, 0.0
    %v116 = vmax.f32 %v112, 0.0
    %vm117 = vcmask 261120
    %118 = vst.msk [vmem:[#allocation7] sm:$0xff] %vm117, %v115
    %119 = vst.msk [vmem:[#allocation7 + $0x8] sm:$0xff] %vm117, %v116
    // Predicated region
    $region22: #{tpu_custom_call.1} parent=1 // pred_check
      _
    $region23: #{tpu_custom_call.1} parent=1 // pred_check_branch
      %121 = sbr.rel (0) target = $region25
    $region24: #{tpu_custom_call.1} parent=1 // pred_region
      %s123 = ssub.s32 256, 256
      %124 = vsyncadd [#allocation4], %s123
      %s125 = sshll.u32 [#allocation7], 4
      %s126 = int_to_ptr.vmem [resolvable:$true] %s125
      %131 = dma.vmem_to_hbm [thread:$0]  %s126, 256, %s3, [#allocation4], 128, 128, 8
    $region25: #{tpu_custom_call.1} parent=1 // pred_fallthru
      _
    // Predicated region
    $region26: #{tpu_custom_call.1} parent=1 // pred_check
      _
    $region27: #{tpu_custom_call.1} parent=1 // pred_check_branch
      %133 = sbr.rel (0) target = $region29
    $region28: #{tpu_custom_call.1} parent=1 // pred_region
      %134 = dma.done [#allocation4], 256
    $region29: #{tpu_custom_call.1} parent=1 // pred_fallthru
      _
    %135 = vsyncpa [#allocation3], 1
    %136 = vsyncpa [#allocation6], 1
    %137 = vsyncpa [#allocation4], 1

</llo_original>
